<compile_context>
chip_gen: v5e
topology: v5e:2x2
jax: 0.10.0
libtpu: 0.0.40
codegen_flags: <defaults>
</compile_context>

<pallas_src>
import jax
import jax.numpy as jnp
from jax.experimental import pallas as pl
from jax.experimental.pallas import tpu as pltpu

_LANE_CANDIDATES = (512, 256, 128)   # lane-dense last dim (multiple of 128)
_TARGET_TILE_BYTES = 4 << 20         # ~4 MiB per grid step (good on v5e/v6e/v7x)
_VMEM_LIMIT_BYTES = 32 << 20         # 16 MiB of double-buffered in+out tiles + headroom
_PALLAS_MIN_BYTES = 1 << 18          # below ~256 KiB, fused XLA minimum wins (launch overhead)


def _round_up(a: int, b: int) -> int:
    return ((a + b - 1) // b) * b


def _score_cap_kernel(cap_ref, x_ref, o_ref):
    # cap lives in SMEM; broadcast + min is a pure VPU op, kernel is DMA-bound.
    # NOTE: for integer dtypes the cast truncates toward zero, matching the fallback path.
    o_ref[...] = jnp.minimum(x_ref[...], cap_ref[0].astype(o_ref.dtype))


def score_cap(x: jnp.ndarray, cap: float, *,
              pallas_min_bytes: int = _PALLAS_MIN_BYTES,
              donate: bool = False) -> jnp.ndarray:
    """Pallas implementation of ScoreCap.forward: clip(x, max=cap)."""
    if x.size == 0:
        return x

    n = x.size
    nbytes = n * x.dtype.itemsize

    # Largest lane-dense column count that divides the flat length exactly.
    lane = next((c for c in _LANE_CANDIDATES if n % c == 0), None)

    if nbytes < pallas_min_bytes or lane is None:
        # Tiny input, or ragged length (n % 128 != 0): XLA's fused scalar minimum already
        # runs at HBM roofline; pad+slice copies around a Pallas call would only lose.
        return jnp.minimum(x, jnp.asarray(cap, x.dtype))

    orig_shape = x.shape
    rows = n // lane
    x2 = x.reshape(rows, lane)            # metadata-only reshape, no HBM copy

    itemsize = x.dtype.itemsize
    sublane = max(8, 32 // itemsize)      # packed-sublane multiple: 8 f32, 16 bf16, 32 int8
    tile_rows = max(sublane,
                    (_TARGET_TILE_BYTES // (lane * itemsize)) // sublane * sublane)

    if tile_rows >= rows:
        if rows > sublane:
            # Ensure >= 2 grid steps so the "parallel" axis spans both v7x TensorCores.
            tile_rows = _round_up(pl.cdiv(rows, 2), sublane)
        else:
            tile_rows = rows              # single block; block dim == full array dim is legal
    grid = pl.cdiv(rows, tile_rows)       # partial last block is masked by Pallas — no padding

    cap_arr = jnp.full((1,), cap, dtype=jnp.float32)

    out2 = pl.pallas_call(
        _score_cap_kernel,
        out_shape=jax.ShapeDtypeStruct((rows, lane), x2.dtype),
        grid_spec=pltpu.PrefetchScalarGridSpec(
            num_scalar_prefetch=0,
            grid=(grid,),
            in_specs=[
                pl.BlockSpec(memory_space=pltpu.MemorySpace.SMEM),    # cap scalar
                pl.BlockSpec((tile_rows, lane), lambda i: (i, 0)),    # x tile
            ],
            out_specs=pl.BlockSpec((tile_rows, lane), lambda i: (i, 0)),
        ),
        compiler_params=pltpu.CompilerParams(
            dimension_semantics=("parallel",),
            vmem_limit_bytes=_VMEM_LIMIT_BYTES,
        ),
        input_output_aliases=({1: 0} if donate else {}),
    )(cap_arr, x2)

    return out2.reshape(orig_shape)


if __name__ == "__main__":
    # ScoreCap has no learnable parameters; only the `cap` hyperparameter.
    cap = 0.5
    key = jax.random.PRNGKey(0)
    k1, k2, k3 = jax.random.split(key, 3)

    # Small, representative input (batch=2, channels=4, 16x16 scores).
    x = jax.random.normal(k1, (2, 4, 16, 16), dtype=jnp.float32)
    out = jax.block_until_ready(score_cap(x, cap, pallas_min_bytes=0))  # force the Pallas path
    ref = jnp.minimum(x, cap)
    assert out.shape == x.shape and out.dtype == x.dtype
    assert bool(jnp.allclose(out, ref)), "mismatch vs reference clip (small input)"

    # Larger input whose row count is NOT a multiple of tile_rows: exercises the masked
    # partial last block (no pad / slice copies anywhere in the wrapper).
    x_big = jax.random.normal(k2, (3, 7, 384, 256), dtype=jnp.float32)
    out_big = jax.block_until_ready(score_cap(x_big, cap))
    assert out_big.shape == x_big.shape and out_big.dtype == x_big.dtype
    assert bool(jnp.allclose(out_big, jnp.minimum(x_big, cap))), "mismatch (large input)"

    # bf16 input: dtype-scaled tile_rows (packed-sublane multiple of 16, ~4 MiB/step).
    x_bf = jax.random.normal(k3, (4, 512, 512), dtype=jnp.bfloat16)
    out_bf = jax.block_until_ready(score_cap(x_bf, cap))
    ref_bf = jnp.minimum(x_bf, jnp.asarray(cap, jnp.bfloat16))
    assert out_bf.dtype == x_bf.dtype
    assert bool(jnp.allclose(out_bf.astype(jnp.float32),
                             ref_bf.astype(jnp.float32))), "mismatch (bf16 input)"

    # Ragged element count (n % 128 != 0) and tiny inputs take the fused-XLA fallback.
    x_ragged = jax.random.normal(k1, (3, 7, 333, 257), dtype=jnp.float32)
    out_ragged = jax.block_until_ready(score_cap(x_ragged, cap))
    assert bool(jnp.allclose(out_ragged, jnp.minimum(x_ragged, cap))), "mismatch (ragged input)"

    out_fast = jax.block_until_ready(score_cap(x, cap))  # tiny-input fast path
    assert bool(jnp.allclose(out_fast, ref)), "mismatch vs reference clip (fast path)"

    print("KERNEL_OK")
</pallas_src>

<mosaic_0001>
module attributes {stable_mosaic.version = 11 : i64} {
  func.func @_score_cap_kernel(%arg0: i32, %arg1: memref<1xf32, #tpu.memory_space<smem>>, %arg2: memref<4x512xf32, #tpu.memory_space<vmem>>, %arg3: memref<4x512xf32, #tpu.memory_space<vmem>>) attributes {dimension_semantics = [#tpu.dimension_semantics<parallel>], iteration_bounds = array<i64: 1>, scalar_prefetch = 0 : i64, scratch_operands = 0 : i64, tpu.core_type = #tpu.core_type<tc>, window_params = [{transform_indices = @transform_0, window_bounds = array<i64: 1>}, {transform_indices = @transform_1, window_bounds = array<i64: 4, 512>}, {transform_indices = @transform_2, window_bounds = array<i64: 4, 512>}]} {
    %c0 = arith.constant 0 : index
    %c0_0 = arith.constant 0 : index
    %0 = vector.load %arg2[%c0, %c0_0] : memref<4x512xf32, #tpu.memory_space<vmem>>, vector<4x512xf32>
    %c0_1 = arith.constant 0 : index
    %1 = memref.load %arg1[%c0_1] : memref<1xf32, #tpu.memory_space<smem>>
    %2 = vector.broadcast %1 : f32 to vector<4x512xf32>
    %3 = arith.minimumf %0, %2 : vector<4x512xf32>
    %c0_2 = arith.constant 0 : index
    %c0_3 = arith.constant 0 : index
    %4 = vector.load %arg3[%c0_2, %c0_3] : memref<4x512xf32, #tpu.memory_space<vmem>>, vector<4x512xf32>
    tpu.vector_store %arg3[%c0_2, %c0_3], %3 {strides = array<i32>} : memref<4x512xf32, #tpu.memory_space<vmem>>, vector<4x512xf32>,
    return
  }
  func.func @transform_0(%arg0: i32) -> i32 {
    %c0_i32 = arith.constant 0 : i32
    %c0_i32_0 = arith.constant 0 : i32
    return %c0_i32 : i32
  }
  func.func @transform_1(%arg0: i32) -> (i32, i32) {
    %c0_i32 = arith.constant 0 : i32
    %c0_i32_0 = arith.constant 0 : i32
    return %arg0, %c0_i32 : i32, i32
  }
  func.func @transform_2(%arg0: i32) -> (i32, i32) {
    %c0_i32 = arith.constant 0 : i32
    %c0_i32_0 = arith.constant 0 : i32
    return %arg0, %c0_i32 : i32, i32
  }
}

</mosaic_0001>

<llo_original>
// kernel: tpu_custom_call.1
$region0: #{tpu_custom_call.1}
  #allocation0 [shape = 'u32[]', space=smem, size = 0x4, offset = 0x4, fixed_abs, tag = 'smem constant byte address 0x4 - core index']
  #allocation1 [shape = 'u32[72,128]{1,0:T(1,128)}', space=vmem, size = 0x9000, scoped, tag = 'internal scratch']
  #allocation2 [shape = 'f32[1]{0:T(128)S(6)}', space=smem, size = 0x200, scoped, tag = 'scoped memory for tpu_custom_call.1']
  %s0 = inlined_call_operand.<no memory space> [shape: f32[1], index: 0, kind: input, shape index: {}]
  %s1 = inlined_call_operand.hbm [shape: f32[4,512], index: 1, kind: input, shape index: {}]
  %s2 = inlined_call_operand.hbm [shape: f32[4,512], index: 2, kind: output, shape index: {}]
  %s3 = sld [smem:[#allocation0]]
  $region22: #{tpu_custom_call.1} parent=0
    _
  %s5 = ssub.s32 1, %s3
  %s6 = scalar_select 0, %s5, %s3
  %7 = sst [smem:[#allocation2]] %s0
  $region1: #{tpu_custom_call.1} parent=0
    #allocation3 [shape = 'u8[8192]{0}', space=vmem, size = 0x2000, scoped, tag = 'input window, operand 1, single buffered']
    #allocation4 [shape = 's32[1]{0}', space=sflag, size = 0x4, scoped, tag = 'scoped memory for tpu_custom_call.1']
    #allocation5 [shape = 's32[1]{0}', space=sflag, size = 0x4, scoped, tag = 'scoped memory for tpu_custom_call.1']
    #allocation6 [shape = 'u8[8192]{0}', space=vmem, size = 0x2000, scoped, tag = 'output window, operand 0, single buffered']
    %8 = vsyncpa [#allocation4], 0
    %9 = vsyncpa [#allocation5], 0
    // Predicated region
    $region2: #{tpu_custom_call.1} parent=1 // pred_check
      _
    $region3: #{tpu_custom_call.1} parent=1 // pred_check_branch
      %11 = sbr.rel (0) target = $region5
    $region4: #{tpu_custom_call.1} parent=1 // pred_region
      _
    $region5: #{tpu_custom_call.1} parent=1 // pred_fallthru
      _
    // Predicated region
    $region6: #{tpu_custom_call.1} parent=1 // pred_check
      _
    $region7: #{tpu_custom_call.1} parent=1 // pred_check_branch
      %13 = sbr.rel (0) target = $region9
    $region8: #{tpu_custom_call.1} parent=1 // pred_region
      %15 = vsyncadd [#allocation4], 0
      %s17 = sshll.u32 %s1, 4
      %s18 = int_to_ptr.hbm [resolvable:$true] %s17
      %s19 = sshll.u32 [#allocation3], 4
      %s20 = int_to_ptr.vmem [resolvable:$true] %s19
      %22 = dma.hbm_to_vmem [thread:$0]  %s18, 256, %s20, [#allocation4]
    $region9: #{tpu_custom_call.1} parent=1 // pred_fallthru
      _
    // Predicated region
    $region10: #{tpu_custom_call.1} parent=1 // pred_check
      _
    $region11: #{tpu_custom_call.1} parent=1 // pred_check_branch
      %24 = sbr.rel (0) target = $region13
    $region12: #{tpu_custom_call.1} parent=1 // pred_region
      %26 = dma.done [#allocation4], 256
    $region13: #{tpu_custom_call.1} parent=1 // pred_fallthru
      _
    %v27 = vld [vmem:[#allocation3] sm:$0xff]
    %v28 = vld [vmem:[#allocation3 + $0x8] sm:$0xff]
    %s29 = sld [smem:[#allocation2]]
    %v30 = vstv %s29
    %v31 = vmin.f32 %v27, %v30
    %v32 = vmin.f32 %v28, %v30
    %33 = vst [vmem:[#allocation6] sm:$0xff] %v31
    %34 = vst [vmem:[#allocation6 + $0x8] sm:$0xff] %v32
    // Predicated region
    $region14: #{tpu_custom_call.1} parent=1 // pred_check
      _
    $region15: #{tpu_custom_call.1} parent=1 // pred_check_branch
      %36 = sbr.rel (0) target = $region17
    $region16: #{tpu_custom_call.1} parent=1 // pred_region
      %38 = vsyncadd [#allocation5], 0
      %s40 = sshll.u32 [#allocation6], 4
      %s41 = int_to_ptr.vmem [resolvable:$true] %s40
      %s42 = sshll.u32 %s2, 4
      %s43 = int_to_ptr.hbm [resolvable:$true] %s42
      %45 = dma.vmem_to_hbm [thread:$0]  %s41, 256, %s43, [#allocation5]
    $region17: #{tpu_custom_call.1} parent=1 // pred_fallthru
      _
    // Predicated region
    $region18: #{tpu_custom_call.1} parent=1 // pred_check
      _
    $region19: #{tpu_custom_call.1} parent=1 // pred_check_branch
      %47 = sbr.rel (0) target = $region21
    $region20: #{tpu_custom_call.1} parent=1 // pred_region
      %49 = dma.done [#allocation5], 256
    $region21: #{tpu_custom_call.1} parent=1 // pred_fallthru
      _
    %50 = vsyncpa [#allocation4], 1
    %51 = vsyncpa [#allocation5], 1

</llo_original>
